<compile_context>
chip_gen: v7x
topology: tpu7x:2x2x1
jax: 0.10.0
libtpu: 0.0.40
codegen_flags: <defaults>
</compile_context>

<pallas_src>
import functools

import jax
import jax.numpy as jnp
from jax import lax
from jax.experimental import pallas as pl
from jax.experimental.pallas import tpu as pltpu

_UNROLL_K = 8                      # fully unroll the selection loop only for small k
_VREG_TARGET_BYTES = 128 * 1024    # keep the live row tile around the vreg-file size


def _nnloss_kernel(x_ref, loss_ref, *, k):
    """Per-row loss for one (TB, N) batch tile: -sum(log(topk(x, k, dim=1))) / k."""
    x = x_ref[...]                                  # native dtype (bf16 stays bf16 on v6e/v7x)
    TB, N = x.shape
    lane = lax.broadcasted_iota(jnp.int32, (TB, N), 1)
    inv_k = jnp.float32(1.0 / k)

    def select_max(x_cur):
        # exact per-row max + knock out its first occurrence (tie handling yields the same
        # value multiset as torch.topk, which is all the loss depends on).
        m = jnp.max(x_cur, axis=-1, keepdims=True)
        idx = jnp.min(jnp.where(x_cur == m, lane, N), axis=-1, keepdims=True)
        x_next = jnp.where(lane == idx, -jnp.inf, x_cur)
        return m, x_next

    if k <= _UNROLL_K:
        # Fully unrolled: stash the k maxima and take the log once at the end
        # (single batched EUP pass instead of k tiny (TB,1) pushes).
        x_cur = x
        maxima = []
        for _ in range(k):
            m, x_cur = select_max(x_cur)
            maxima.append(m)
        vals = jnp.concatenate(maxima, axis=-1).astype(jnp.float32)       # (TB, k)
        loss = -jnp.sum(jnp.log(vals), axis=-1, keepdims=True) * inv_k
    else:
        # Rolled loop bounds code size / live ranges for large k.
        # TODO(synk): for very large N or k, switch to the two-stage per-128-lane-chunk
        # insertion top-k (single data pass, then a small final selection) to cut XLU reduces.
        def body(_, carry):
            x_cur, acc = carry
            m, x_next = select_max(x_cur)
            return x_next, acc + jnp.log(m.astype(jnp.float32))

        _, acc = lax.fori_loop(0, k, body, (x, jnp.zeros((TB, 1), jnp.float32)))
        loss = -acc * inv_k

    loss_ref[...] = loss


def _pick_row_tile(B, N, itemsize):
    # Rows per grid step: large enough to amortize ~0.35us per-step overhead, small enough
    # that the live (TB, N) tile stays roughly within the vreg file and the double-buffered
    # input DMA is tiny relative to VMEM on every generation (incl. v7x's 64 MiB).
    tb = _VREG_TARGET_BYTES // max(N * itemsize, 1)
    tb = max(8, min(256, (tb // 8) * 8))
    if B <= tb:
        return max(8, ((B + 7) // 8) * 8)   # single tile covering the (padded) batch
    return tb


def nn_loss(inputs, k, *, dim=1, reduction="mean", row_tile=None):
    """Pallas NNLoss.forward for 2-D inputs with top-k over dim=1."""
    if inputs.ndim != 2 or dim != 1:
        raise NotImplementedError("kernel implements the 2-D, dim=1 case")
    if reduction not in ("mean", "sum", "none"):
        raise ValueError(f"unsupported reduction: {reduction}")
    B, N = inputs.shape
    k = int(k)
    assert 1 <= k <= N, "k must be in [1, N]"

    itemsize = jnp.dtype(inputs.dtype).itemsize
    TB = int(row_tile) if row_tile is not None else _pick_row_tile(B, N, itemsize)
    assert TB % 8 == 0, "row tile must be a multiple of 8 sublanes"
    B_pad = ((B + TB - 1) // TB) * TB
    x = inputs
    if B_pad != B:
        # pad rows with ones: log(1)=0, never NaN, and padded rows are sliced away below
        x = jnp.concatenate([x, jnp.ones((B_pad - B, N), inputs.dtype)], axis=0)
    grid_b = B_pad // TB

    tile_bytes = TB * N * itemsize
    vmem_limit = int(min(64 << 20, max(32 << 20, 4 * tile_bytes + (2 << 20))))

    kernel = functools.partial(_nnloss_kernel, k=k)
    loss_rows = pl.pallas_call(
        kernel,
        out_shape=jax.ShapeDtypeStruct((B_pad, 1), jnp.float32),
        grid=(grid_b,),
        in_specs=[pl.BlockSpec((TB, N), lambda i: (i, 0))],
        out_specs=pl.BlockSpec((TB, 1), lambda i: (i, 0)),
        compiler_params=pltpu.CompilerParams(
            dimension_semantics=("parallel",),     # rows independent -> v7x dual-TC sharding
            vmem_limit_bytes=vmem_limit,
        ),
        cost_estimate=pl.CostEstimate(
            flops=4 * k * B_pad * N,
            transcendentals=B_pad * k,
            bytes_accessed=B_pad * N * itemsize + B_pad * 4,
        ),
    )(x)

    loss = loss_rows[:B, 0]
    if reduction == "mean":
        return jnp.mean(loss)
    if reduction == "sum":
        return jnp.sum(loss)
    return loss


def _nn_loss_ref(inputs, k, reduction="mean"):
    top_values = lax.top_k(inputs.astype(jnp.float32), k)[0]
    loss = -jnp.log(top_values).sum(axis=1) / k
    if reduction == "mean":
        return loss.mean()
    if reduction == "sum":
        return loss.sum()
    return loss


if __name__ == "__main__":
    key = jax.random.PRNGKey(0)
    key1, key2 = jax.random.split(key)

    # Case 1: canonical small case (B=8, N=128, k=4), mean reduction.
    B, N, K = 8, 128, 4
    inputs = jax.nn.softmax(jax.random.normal(key1, (B, N), jnp.float32), axis=1)
    out = jax.block_until_ready(nn_loss(inputs, K, dim=1, reduction="mean"))
    ref = _nn_loss_ref(inputs, K, reduction="mean")
    assert jnp.allclose(out, ref, rtol=1e-5, atol=1e-6), (out, ref)

    # Case 2: exercises batch tiling + row padding (B=20 -> 3 grid tiles of 8) and 'sum'.
    B2, N2, K2 = 20, 256, 5
    inputs2 = jax.nn.softmax(jax.random.normal(key2, (B2, N2), jnp.float32), axis=1)
    out2 = jax.block_until_ready(nn_loss(inputs2, K2, dim=1, reduction="sum", row_tile=8))
    ref2 = _nn_loss_ref(inputs2, K2, reduction="sum")
    assert jnp.allclose(out2, ref2, rtol=1e-5, atol=1e-6), (out2, ref2)

    # Case 3: rolled-loop path (k > unroll threshold) and 'none' reduction.
    out3 = jax.block_until_ready(nn_loss(inputs2, 12, dim=1, reduction="none"))
    ref3 = _nn_loss_ref(inputs2, 12, reduction="none")
    assert jnp.allclose(out3, ref3, rtol=1e-5, atol=1e-6), (out3, ref3)

    print("KERNEL_OK")
</pallas_src>

<mosaic_0001>
module attributes {stable_mosaic.version = 11 : i64} {
  func.func @_nnloss_kernel(%arg0: i32, %arg1: memref<8x128xf32, #tpu.memory_space<vmem>>, %arg2: memref<8x1xf32, #tpu.memory_space<vmem>>) attributes {dimension_semantics = [#tpu.dimension_semantics<parallel>], iteration_bounds = array<i64: 1>, scalar_prefetch = 0 : i64, scratch_operands = 0 : i64, tpu.core_type = #tpu.core_type<tc>, window_params = [{transform_indices = @transform_0, window_bounds = array<i64: 8, 128>}, {transform_indices = @transform_1, window_bounds = array<i64: 8, 1>}]} {
    %c0 = arith.constant 0 : index
    %c0_0 = arith.constant 0 : index
    %0 = vector.load %arg1[%c0, %c0_0] : memref<8x128xf32, #tpu.memory_space<vmem>>, vector<8x128xf32>
    %1 = tpu.iota {dimensions = array<i32: 1>} : vector<8x128xi32>
    %cst = arith.constant dense<0xFF800000> : vector<8xf32>
    %2 = vector.multi_reduction <maximumf>, %0, %cst [1] : vector<8x128xf32> to vector<8xf32>
    %3 = vector.shape_cast %2 : vector<8xf32> to vector<8x1xf32>
    %4 = vector.broadcast %3 : vector<8x1xf32> to vector<8x128xf32>
    %5 = arith.cmpf oeq, %0, %4 : vector<8x128xf32>
    %c128_i32 = arith.constant 128 : i32
    %6 = vector.broadcast %c128_i32 : i32 to vector<8x128xi32>
    %7 = arith.select %5, %1, %6 : vector<8x128xi1>, vector<8x128xi32>
    %cst_1 = arith.constant dense<2147483647> : vector<8xi32>
    %8 = vector.multi_reduction <minsi>, %7, %cst_1 [1] : vector<8x128xi32> to vector<8xi32>
    %9 = vector.shape_cast %8 : vector<8xi32> to vector<8x1xi32>
    %10 = vector.broadcast %9 : vector<8x1xi32> to vector<8x128xi32>
    %11 = arith.cmpi eq, %1, %10 : vector<8x128xi32>
    %cst_2 = arith.constant 0xFF800000 : f32
    %12 = vector.broadcast %cst_2 : f32 to vector<8x128xf32>
    %13 = arith.select %11, %12, %0 : vector<8x128xi1>, vector<8x128xf32>
    %cst_3 = arith.constant dense<0xFF800000> : vector<8xf32>
    %14 = vector.multi_reduction <maximumf>, %13, %cst_3 [1] : vector<8x128xf32> to vector<8xf32>
    %15 = vector.shape_cast %14 : vector<8xf32> to vector<8x1xf32>
    %16 = vector.broadcast %15 : vector<8x1xf32> to vector<8x128xf32>
    %17 = arith.cmpf oeq, %13, %16 : vector<8x128xf32>
    %c128_i32_4 = arith.constant 128 : i32
    %18 = vector.broadcast %c128_i32_4 : i32 to vector<8x128xi32>
    %19 = arith.select %17, %1, %18 : vector<8x128xi1>, vector<8x128xi32>
    %cst_5 = arith.constant dense<2147483647> : vector<8xi32>
    %20 = vector.multi_reduction <minsi>, %19, %cst_5 [1] : vector<8x128xi32> to vector<8xi32>
    %21 = vector.shape_cast %20 : vector<8xi32> to vector<8x1xi32>
    %22 = vector.broadcast %21 : vector<8x1xi32> to vector<8x128xi32>
    %23 = arith.cmpi eq, %1, %22 : vector<8x128xi32>
    %cst_6 = arith.constant 0xFF800000 : f32
    %24 = vector.broadcast %cst_6 : f32 to vector<8x128xf32>
    %25 = arith.select %23, %24, %13 : vector<8x128xi1>, vector<8x128xf32>
    %cst_7 = arith.constant dense<0xFF800000> : vector<8xf32>
    %26 = vector.multi_reduction <maximumf>, %25, %cst_7 [1] : vector<8x128xf32> to vector<8xf32>
    %27 = vector.shape_cast %26 : vector<8xf32> to vector<8x1xf32>
    %28 = vector.broadcast %27 : vector<8x1xf32> to vector<8x128xf32>
    %29 = arith.cmpf oeq, %25, %28 : vector<8x128xf32>
    %c128_i32_8 = arith.constant 128 : i32
    %30 = vector.broadcast %c128_i32_8 : i32 to vector<8x128xi32>
    %31 = arith.select %29, %1, %30 : vector<8x128xi1>, vector<8x128xi32>
    %cst_9 = arith.constant dense<2147483647> : vector<8xi32>
    %32 = vector.multi_reduction <minsi>, %31, %cst_9 [1] : vector<8x128xi32> to vector<8xi32>
    %33 = vector.shape_cast %32 : vector<8xi32> to vector<8x1xi32>
    %34 = vector.broadcast %33 : vector<8x1xi32> to vector<8x128xi32>
    %35 = arith.cmpi eq, %1, %34 : vector<8x128xi32>
    %cst_10 = arith.constant 0xFF800000 : f32
    %36 = vector.broadcast %cst_10 : f32 to vector<8x128xf32>
    %37 = arith.select %35, %36, %25 : vector<8x128xi1>, vector<8x128xf32>
    %cst_11 = arith.constant dense<0xFF800000> : vector<8xf32>
    %38 = vector.multi_reduction <maximumf>, %37, %cst_11 [1] : vector<8x128xf32> to vector<8xf32>
    %39 = vector.shape_cast %38 : vector<8xf32> to vector<8x1xf32>
    %40 = tpu.concatenate %3, %15, %27, %39 in 1 : vector<8x1xf32>, vector<8x1xf32>, vector<8x1xf32>, vector<8x1xf32> -> vector<8x4xf32>
    %41 = math.log %40 : vector<8x4xf32>
    %cst_12 = arith.constant dense<0.000000e+00> : vector<8xf32>
    %42 = vector.multi_reduction <add>, %41, %cst_12 [1] : vector<8x4xf32> to vector<8xf32>
    %43 = vector.shape_cast %42 : vector<8xf32> to vector<8x1xf32>
    %cst_13 = arith.constant 0.000000e+00 : f32
    %44 = vector.broadcast %cst_13 : f32 to vector<8x1xf32>
    %45 = arith.subf %44, %43 : vector<8x1xf32>
    %cst_14 = arith.constant 2.500000e-01 : f32
    %46 = vector.broadcast %cst_14 : f32 to vector<8x1xf32>
    %47 = arith.mulf %45, %46 : vector<8x1xf32>
    %c0_15 = arith.constant 0 : index
    %c0_16 = arith.constant 0 : index
    %48 = vector.load %arg2[%c0_15, %c0_16] : memref<8x1xf32, #tpu.memory_space<vmem>>, vector<8x1xf32>
    tpu.vector_store %arg2[%c0_15, %c0_16], %47 {strides = array<i32>} : memref<8x1xf32, #tpu.memory_space<vmem>>, vector<8x1xf32>,
    return
  }
  func.func @transform_0(%arg0: i32) -> (i32, i32) {
    %c0_i32 = arith.constant 0 : i32
    %c0_i32_0 = arith.constant 0 : i32
    return %arg0, %c0_i32 : i32, i32
  }
  func.func @transform_1(%arg0: i32) -> (i32, i32) {
    %c0_i32 = arith.constant 0 : i32
    %c0_i32_0 = arith.constant 0 : i32
    return %arg0, %c0_i32 : i32, i32
  }
}

</mosaic_0001>

<llo_original>
// kernel: tpu_custom_call.1
$region0: #{tpu_custom_call.1}
  #allocation0 [shape = 'u32[]', space=smem, size = 0x4, offset = 0x4, fixed_abs, tag = 'smem constant byte address 0x4 - core index']
  #allocation1 [shape = 'u32[144,128]{1,0:T(1,128)}', space=vmem, size = 0x12000, scoped, tag = 'internal scratch']
  %s0 = inlined_call_operand.hbm [shape: f32[8,128], index: 0, kind: input, shape index: {}]
  %s1 = inlined_call_operand.vmem [shape: f32[8,1], index: 1, kind: output, shape index: {}]
  %s2 = sld [smem:[#allocation0]]
  $region18: #{tpu_custom_call.1} parent=0
    _
  %s4 = ssub.s32 1, %s2
  %s5 = scalar_select 0, %s4, %s2
  $region1: #{tpu_custom_call.1} parent=0
    #allocation2 [shape = 'u8[4096]{0}', space=vmem, size = 0x1000, scoped, tag = 'input window, operand 0, single buffered']
    #allocation3 [shape = 's32[1]{0}', space=sflag, size = 0x4, scoped, tag = 'scoped memory for tpu_custom_call.1']
    %6 = vsyncpa [#allocation3], 0
    // Predicated region
    $region2: #{tpu_custom_call.1} parent=1 // pred_check
      _
    $region3: #{tpu_custom_call.1} parent=1 // pred_check_branch
      %8 = sbr.rel (0) target = $region5
    $region4: #{tpu_custom_call.1} parent=1 // pred_region
      %s10 = ssub.s32 128, 128
      %11 = vsyncadd [#allocation3], %s10
      %s13 = sshll.u32 [#allocation2], 4
      %s14 = int_to_ptr.vmem [resolvable:$true] %s13
      %16 = dma.hbm_to_vmem [thread:$0]  %s0, 128, %s14, [#allocation3]
    $region5: #{tpu_custom_call.1} parent=1 // pred_fallthru
      _
    // Predicated region
    $region6: #{tpu_custom_call.1} parent=1 // pred_check
      _
    $region7: #{tpu_custom_call.1} parent=1 // pred_check_branch
      %18 = sbr.rel (0) target = $region9
    $region8: #{tpu_custom_call.1} parent=1 // pred_region
      %19 = dma.done [#allocation3], 128
    $region9: #{tpu_custom_call.1} parent=1 // pred_fallthru
      _
    %v20 = vld [vmem:[#allocation2] sm:$0xff]
    %v21 = vlaneseq
    %v22 = vand.u32 %v21, 127
    %23 = vmax.xlane.f32.xlu0 %v20
    %v24 = vpop.xlane.xlu0 %23
    %vm25 = vcmp.eq.f32.partialorder %v20, %v24
    %v26 = vsel %vm25, %v22, 128
    %v27 = vand.u32 %v26, 65535
    %v28 = vshra.s32 %v26, 16
    %v29 = vcvt.s32.f32 %v27
    %v30 = vcvt.s32.f32 %v28
    %31 = vmin.xlane.f32.xlu0 %v30
    %v32 = vpop.xlane.xlu0 %31
    %vm33 = vcmp.eq.f32.partialorder %v30, %v32
    %v34 = vsel %vm33, %v29, inf
    %35 = vmin.xlane.f32.xlu0 %v34
    %v36 = vpop.xlane.xlu0 %35
    %v37 = vcvt.f32.s32 %v36
    %v38 = vcvt.f32.s32 %v32
    %v39 = vshll.u32 %v38, 16
    %v40 = vadd.s32 %v39, %v37
    %vm41 = vcmp.eq.s32.totalorder %v22, %v40
    %v42 = vsel %vm41, -inf, %v20
    %43 = vmax.xlane.f32.xlu0 %v42
    %v44 = vpop.xlane.xlu0 %43
    %vm45 = vcmp.eq.f32.partialorder %v42, %v44
    %v46 = vsel %vm45, %v22, 128
    %v47 = vand.u32 %v46, 65535
    %v48 = vshra.s32 %v46, 16
    %v49 = vcvt.s32.f32 %v47
    %v50 = vcvt.s32.f32 %v48
    %51 = vmin.xlane.f32.xlu0 %v50
    %v52 = vpop.xlane.xlu0 %51
    %vm53 = vcmp.eq.f32.partialorder %v50, %v52
    %v54 = vsel %vm53, %v49, inf
    %55 = vmin.xlane.f32.xlu0 %v54
    %v56 = vpop.xlane.xlu0 %55
    %v57 = vcvt.f32.s32 %v56
    %v58 = vcvt.f32.s32 %v52
    %v59 = vshll.u32 %v58, 16
    %v60 = vadd.s32 %v59, %v57
    %vm61 = vcmp.eq.s32.totalorder %v22, %v60
    %v62 = vsel %vm61, -inf, %v42
    %63 = vmax.xlane.f32.xlu0 %v62
    %v64 = vpop.xlane.xlu0 %63
    %vm65 = vcmp.eq.f32.partialorder %v62, %v64
    %v66 = vsel %vm65, %v22, 128
    %v67 = vand.u32 %v66, 65535
    %v68 = vshra.s32 %v66, 16
    %v69 = vcvt.s32.f32 %v67
    %v70 = vcvt.s32.f32 %v68
    %71 = vmin.xlane.f32.xlu0 %v70
    %v72 = vpop.xlane.xlu0 %71
    %vm73 = vcmp.eq.f32.partialorder %v70, %v72
    %v74 = vsel %vm73, %v69, inf
    %75 = vmin.xlane.f32.xlu0 %v74
    %v76 = vpop.xlane.xlu0 %75
    %v77 = vcvt.f32.s32 %v76
    %v78 = vcvt.f32.s32 %v72
    %v79 = vshll.u32 %v78, 16
    %v80 = vadd.s32 %v79, %v77
    %vm81 = vcmp.eq.s32.totalorder %v22, %v80
    %v82 = vsel %vm81, -inf, %v62
    %83 = vmax.xlane.f32.xlu0 %v82
    %v84 = vpop.xlane.xlu0 %83
    %vm85 = vcmask 7168
    %v86 = vsel %vm85, %v24, %v44
    %vm87 = vcmask 15360
    %v88 = vsel %vm87, %v86, %v64
    %vm89 = vcmask 23552
    %v90 = vsel %vm89, %v88, %v84
    %v91 = vlog2.pop %v90
    %v92 = vmul.f32 %v91, 0.6931472
    %vm93 = vcmask 31744
    %v94 = vsel %vm93, %v92, 0.0
    %95 = vadd.xlane.f32.xlu0 %v94
    %v96 = vpop.xlane.xlu0 %95
    %v97 = vsub.f32 0.0, %v96
    %v98 = vmul.f32 %v97, 0.25
    %99 = vst.msk [vmem:[%s1] sm:$0xff] %vm85, %v98
    // Predicated region
    $region10: #{tpu_custom_call.1} parent=1 // pred_check
      _
    $region11: #{tpu_custom_call.1} parent=1 // pred_check_branch
      %101 = sbr.rel (0) target = $region13
    $region12: #{tpu_custom_call.1} parent=1 // pred_region
      _
    $region13: #{tpu_custom_call.1} parent=1 // pred_fallthru
      _
    // Predicated region
    $region14: #{tpu_custom_call.1} parent=1 // pred_check
      _
    $region15: #{tpu_custom_call.1} parent=1 // pred_check_branch
      %103 = sbr.rel (0) target = $region17
    $region16: #{tpu_custom_call.1} parent=1 // pred_region
      _
    $region17: #{tpu_custom_call.1} parent=1 // pred_fallthru
      _
    %104 = vsyncpa [#allocation3], 1

</llo_original>
